<compile_context>
chip_gen: v7x
topology: tpu7x:2x2x1
jax: 0.10.0
libtpu: 0.0.40
codegen_flags: <defaults>
</compile_context>

<pallas_src>
import math
import jax
import jax.numpy as jnp
from jax.experimental import pallas as pl
from jax.experimental.pallas import tpu as pltpu

STATE_SIZE = 9
HIDDEN = 64
# action space of InventoryManagementEnv: 2*2*2 * 4*4 * 3*3 = 1152  (lane-dense: 9*128)
ACTION_SIZE = 2 * 2 * 2 * 4 * 4 * 3 * 3

XLA_SMALL_BATCH = 8   # B <= this -> plain XLA (Pallas is pure overhead at grid=1)


# --------------------------------------------------------------------------- kernels
def _mlp(x_ref, w1_ref, b1_ref, w2_ref, b2_ref, w3_ref, b3_ref):
    """Shared 3-layer MLP body: bf16 MXU matmuls, f32 accumulation, f32 biases."""
    h1 = jnp.dot(x_ref[...].astype(jnp.bfloat16), w1_ref[...],
                 preferred_element_type=jnp.float32)
    h1 = jnp.maximum(h1 + b1_ref[...], 0.0)
    h2 = jnp.dot(h1.astype(jnp.bfloat16), w2_ref[...],
                 preferred_element_type=jnp.float32)
    h2 = jnp.maximum(h2 + b2_ref[...], 0.0)
    # Note: K=64 underfills the MXU contraction depth -- architectural floor, the
    # forward kernel is store-bound anyway.
    q = jnp.dot(h2.astype(jnp.bfloat16), w3_ref[...],
                preferred_element_type=jnp.float32)
    return q + b3_ref[...]


def dqn_kernel(x_ref, w1_ref, b1_ref, w2_ref, b2_ref, w3_ref, b3_ref, o_ref):
    o_ref[...] = _mlp(x_ref, w1_ref, b1_ref, w2_ref, b2_ref, w3_ref, b3_ref
                      ).astype(o_ref.dtype)


def dqn_select_kernel(x_ref, w1_ref, b1_ref, w2_ref, b2_ref, w3_ref, b3_ref,
                      a_ref, qmax_ref):
    """Fused max_a / argmax_a over the 1152 Q-values; Q matrix never leaves VMEM."""
    q = _mlp(x_ref, w1_ref, b1_ref, w2_ref, b2_ref, w3_ref, b3_ref)
    qmax = jnp.max(q, axis=-1, keepdims=True)
    idx = jax.lax.broadcasted_iota(jnp.int32, q.shape, 1)
    amax = jnp.min(jnp.where(q >= qmax, idx, ACTION_SIZE), axis=-1, keepdims=True)
    a_ref[...] = jnp.minimum(amax, ACTION_SIZE - 1).astype(jnp.int32)   # NaN guard
    qmax_ref[...] = qmax.astype(qmax_ref.dtype)


def dqn_gather_kernel(x_ref, a_ref, w1_ref, b1_ref, w2_ref, b2_ref, w3_ref, b3_ref,
                      qa_ref):
    """Fused training forward: Q(s, a) gathered per row via a one-hot lane select."""
    q = _mlp(x_ref, w1_ref, b1_ref, w2_ref, b2_ref, w3_ref, b3_ref)
    idx = jax.lax.broadcasted_iota(jnp.int32, q.shape, 1)
    hit = idx == a_ref[...]                       # (tb, 1152) vs (tb, 1) broadcast
    qa_ref[...] = jnp.sum(jnp.where(hit, q, 0.0), axis=-1,
                          keepdims=True).astype(qa_ref.dtype)


# ------------------------------------------------------------------------- wrappers
def _pad_batch(x, tb_max, min_tiles=2):
    """Pick a sublane-aligned batch tile.

    * padding waste is bounded by ~8 rows per tile (never a whole extra tile),
    * grid has >= min_tiles steps whenever the padded batch allows it, so the
      "parallel" batch axis megacore-shards on v7x.
    """
    B = x.shape[0]
    b_pad = ((max(B, 8) + 7) // 8) * 8                       # sublane-align
    n_tiles = -(-b_pad // max(8, tb_max))                    # ceil(b_pad / tb_max)
    if b_pad >= 16:
        n_tiles = max(n_tiles, min_tiles)
    tb = ((-(-b_pad // n_tiles) + 7) // 8) * 8               # ceil/n, multiple of 8
    b_final = tb * n_tiles
    if b_final != B:
        x = jnp.pad(x, ((0, b_final - B), (0, 0)))
    return x, B, b_final, tb


def _w_specs(params):
    # Constant index_map: weights/biases DMA'd once, VMEM-resident across all tiles.
    return [pl.BlockSpec(p.shape, lambda i: (0, 0)) for p in params]


_COMPILER_PARAMS = pltpu.CompilerParams(
    dimension_semantics=("parallel",),       # megacore-shard the batch axis (v7x)
    vmem_limit_bytes=48 * 1024 * 1024,       # safe on v7x (64 MiB), ample everywhere
)


def dqn_forward(x, params, tb_max=1024, out_dtype=jnp.bfloat16,
                xla_batch_threshold=XLA_SMALL_BATCH):
    """Full Q-value forward pass: (B, 9) -> (B, 1152). bf16 output by default."""
    B = x.shape[0]
    if B <= xla_batch_threshold:
        return dqn_reference(x, params).astype(out_dtype)
    x_p, B, b_pad, tb = _pad_batch(x, tb_max)
    out = pl.pallas_call(
        dqn_kernel,
        out_shape=jax.ShapeDtypeStruct((b_pad, ACTION_SIZE), out_dtype),
        grid=(b_pad // tb,),
        in_specs=[pl.BlockSpec((tb, STATE_SIZE), lambda i: (i, 0))] + _w_specs(params),
        out_specs=pl.BlockSpec((tb, ACTION_SIZE), lambda i: (i, 0)),
        compiler_params=_COMPILER_PARAMS,
    )(x_p, *params)
    return out[:B]


def dqn_select_action(x, params, tb_max=1024, xla_batch_threshold=XLA_SMALL_BATCH):
    """Fused action selection: returns (argmax_a Q, max_a Q), shapes (B,1)."""
    B = x.shape[0]
    if B <= xla_batch_threshold:
        q = dqn_reference(x, params)
        act = jnp.argmax(q, axis=-1)[:, None].astype(jnp.int32)
        return act, jnp.max(q, axis=-1, keepdims=True)
    x_p, B, b_pad, tb = _pad_batch(x, tb_max)
    act, qmax = pl.pallas_call(
        dqn_select_kernel,
        out_shape=(jax.ShapeDtypeStruct((b_pad, 1), jnp.int32),
                   jax.ShapeDtypeStruct((b_pad, 1), jnp.float32)),
        grid=(b_pad // tb,),
        in_specs=[pl.BlockSpec((tb, STATE_SIZE), lambda i: (i, 0))] + _w_specs(params),
        out_specs=[pl.BlockSpec((tb, 1), lambda i: (i, 0)),
                   pl.BlockSpec((tb, 1), lambda i: (i, 0))],
        compiler_params=_COMPILER_PARAMS,
    )(x_p, *params)
    return act[:B], qmax[:B]


def dqn_q_at_actions(x, actions, params, tb_max=1024,
                     xla_batch_threshold=XLA_SMALL_BATCH):
    """Fused training forward: Q(s, a) per row, shape (B, 1) f32. The (B, 1152)
    Q matrix never hits HBM."""
    B = x.shape[0]
    actions = jnp.asarray(actions).reshape(B, 1).astype(jnp.int32)
    if B <= xla_batch_threshold:
        q = dqn_reference(x, params)
        return jnp.take_along_axis(q, actions, axis=-1)
    x_p, B, b_pad, tb = _pad_batch(x, tb_max)
    a_p = jnp.pad(actions, ((0, b_pad - B), (0, 0)))
    qa = pl.pallas_call(
        dqn_gather_kernel,
        out_shape=jax.ShapeDtypeStruct((b_pad, 1), jnp.float32),
        grid=(b_pad // tb,),
        in_specs=[pl.BlockSpec((tb, STATE_SIZE), lambda i: (i, 0)),
                  pl.BlockSpec((tb, 1), lambda i: (i, 0))] + _w_specs(params),
        out_specs=pl.BlockSpec((tb, 1), lambda i: (i, 0)),
        compiler_params=_COMPILER_PARAMS,
    )(x_p, a_p, *params)
    return qa[:B]


# ---------------------------------------------------------------------- init / ref
def init_params(key):
    """PyTorch-style init U(-1/sqrt(fan_in), 1/sqrt(fan_in)); weights bf16, [in,out]."""
    ks = jax.random.split(key, 6)

    def linear(kw, kb, fan_in, fan_out):
        bound = 1.0 / math.sqrt(fan_in)
        w = jax.random.uniform(kw, (fan_in, fan_out), jnp.float32, -bound, bound)
        b = jax.random.uniform(kb, (1, fan_out), jnp.float32, -bound, bound)
        return w.astype(jnp.bfloat16), b

    w1, b1 = linear(ks[0], ks[1], STATE_SIZE, HIDDEN)
    w2, b2 = linear(ks[2], ks[3], HIDDEN, HIDDEN)
    w3, b3 = linear(ks[4], ks[5], HIDDEN, ACTION_SIZE)
    return (w1, b1, w2, b2, w3, b3)


def dqn_reference(x, params):
    """Pure-JAX reference mirroring the kernel's mixed precision (bf16 x bf16 -> f32)."""
    w1, b1, w2, b2, w3, b3 = params
    h1 = jnp.maximum(jnp.dot(x.astype(jnp.bfloat16), w1,
                             preferred_element_type=jnp.float32) + b1, 0.0)
    h2 = jnp.maximum(jnp.dot(h1.astype(jnp.bfloat16), w2,
                             preferred_element_type=jnp.float32) + b2, 0.0)
    return jnp.dot(h2.astype(jnp.bfloat16), w3,
                   preferred_element_type=jnp.float32) + b3


# --------------------------------------------------------------------------- main
if __name__ == "__main__":
    key = jax.random.PRNGKey(0)
    k_params, k_xa, k_xb, k_xc, k_act = jax.random.split(key, 5)

    params = init_params(k_params)

    # states like [inv_m1, inv_m2, inv_m3, inv_p1, inv_p2, bo1, bo2, prev_s1, prev_s2]
    xA = jax.random.uniform(k_xa, (16, STATE_SIZE), jnp.float32, 0.0, 40.0)
    xB = jax.random.uniform(k_xb, (20, STATE_SIZE), jnp.float32, 0.0, 40.0)
    xC = jax.random.uniform(k_xc, (4, STATE_SIZE), jnp.float32, 0.0, 40.0)

    refA = dqn_reference(xA, params)
    refB = dqn_reference(xB, params)
    refC = dqn_reference(xC, params)

    # --- A: full forward, bf16 output, grid forced to >= 2 steps ------------------
    qA = jax.block_until_ready(dqn_forward(xA, params))
    assert qA.shape == (16, ACTION_SIZE) and qA.dtype == jnp.bfloat16
    assert jnp.allclose(qA.astype(jnp.float32), refA, atol=5e-2, rtol=2e-2)

    # --- B: multi-tile grid + batch padding path, f32 output ----------------------
    qB = jax.block_until_ready(dqn_forward(xB, params, tb_max=8,
                                           out_dtype=jnp.float32))
    assert qB.shape == (20, ACTION_SIZE)
    assert jnp.allclose(qB, refB, atol=1e-2, rtol=1e-2)

    # --- C: tiny-batch path routed through plain XLA ------------------------------
    qC = jax.block_until_ready(dqn_forward(xC, params, out_dtype=jnp.float32))
    assert qC.shape == (4, ACTION_SIZE)
    assert jnp.allclose(qC, refC, atol=1e-2, rtol=1e-2)

    # --- D: fused action selection (Pallas path, B=20) ----------------------------
    act, qmax = dqn_select_action(xB, params)
    act = jax.block_until_ready(act)
    assert act.shape == (20, 1) and qmax.shape == (20, 1)
    assert bool(jnp.all((act[:, 0] >= 0) & (act[:, 0] < ACTION_SIZE)))
    row_max = refB.max(axis=-1)
    picked = jnp.take_along_axis(refB, act, axis=-1)[:, 0]
    assert jnp.allclose(qmax[:, 0], row_max, atol=1e-2, rtol=1e-2)
    assert bool(jnp.all(picked >= row_max - 1e-2))

    # --- E: fused action selection (XLA small-batch path, B=4) --------------------
    actC, qmaxC = dqn_select_action(xC, params)
    actC = jax.block_until_ready(actC)
    assert actC.shape == (4, 1) and qmaxC.shape == (4, 1)
    assert jnp.allclose(qmaxC[:, 0], refC.max(axis=-1), atol=1e-2, rtol=1e-2)

    # --- F: fused training gather Q(s, a) (Pallas path, B=20) ---------------------
    actions = jax.random.randint(k_act, (20,), 0, ACTION_SIZE)
    qa = jax.block_until_ready(dqn_q_at_actions(xB, actions, params))
    qa_ref = jnp.take_along_axis(refB, actions[:, None], axis=-1)
    assert qa.shape == (20, 1)
    assert jnp.allclose(qa, qa_ref, atol=1e-2, rtol=1e-2)

    print("KERNEL_OK")
</pallas_src>

<mosaic_0001>
module attributes {stable_mosaic.version = 11 : i64} {
  func.func @dqn_kernel(%arg0: i32, %arg1: memref<8x9xf32, #tpu.memory_space<vmem>>, %arg2: memref<9x64xbf16, #tpu.memory_space<vmem>>, %arg3: memref<1x64xf32, #tpu.memory_space<vmem>>, %arg4: memref<64x64xbf16, #tpu.memory_space<vmem>>, %arg5: memref<1x64xf32, #tpu.memory_space<vmem>>, %arg6: memref<64x1152xbf16, #tpu.memory_space<vmem>>, %arg7: memref<1x1152xf32, #tpu.memory_space<vmem>>, %arg8: memref<8x1152xbf16, #tpu.memory_space<vmem>>) attributes {dimension_semantics = [#tpu.dimension_semantics<parallel>], iteration_bounds = array<i64: 2>, scalar_prefetch = 0 : i64, scratch_operands = 0 : i64, tpu.core_type = #tpu.core_type<tc>, window_params = [{transform_indices = @transform_0, window_bounds = array<i64: 8, 9>}, {pipeline_mode = #tpu.pipeline_mode<synchronous>, transform_indices = @transform_1, window_bounds = array<i64: 9, 64>}, {pipeline_mode = #tpu.pipeline_mode<synchronous>, transform_indices = @transform_2, window_bounds = array<i64: 1, 64>}, {pipeline_mode = #tpu.pipeline_mode<synchronous>, transform_indices = @transform_3, window_bounds = array<i64: 64, 64>}, {pipeline_mode = #tpu.pipeline_mode<synchronous>, transform_indices = @transform_4, window_bounds = array<i64: 1, 64>}, {pipeline_mode = #tpu.pipeline_mode<synchronous>, transform_indices = @transform_5, window_bounds = array<i64: 64, 1152>}, {pipeline_mode = #tpu.pipeline_mode<synchronous>, transform_indices = @transform_6, window_bounds = array<i64: 1, 1152>}, {transform_indices = @transform_7, window_bounds = array<i64: 8, 1152>}]} {
    %c0 = arith.constant 0 : index
    %c0_0 = arith.constant 0 : index
    %0 = vector.load %arg1[%c0, %c0_0] : memref<8x9xf32, #tpu.memory_space<vmem>>, vector<8x9xf32>
    %1 = arith.truncf %0 : vector<8x9xf32> to vector<8x9xbf16>
    %c0_1 = arith.constant 0 : index
    %c0_2 = arith.constant 0 : index
    %2 = vector.load %arg2[%c0_1, %c0_2] : memref<9x64xbf16, #tpu.memory_space<vmem>>, vector<9x64xbf16>
    %cst = arith.constant dense<0.000000e+00> : vector<8x64xf32>
    %3 = tpu.matmul %1, %2, %cst {dimension_numbers = #tpu.dot_dimension_numbers<[1], [0], [0], [1], [0, 0, 1, 1], [], []>} : vector<8x9xbf16>, vector<9x64xbf16>, vector<8x64xf32> -> vector<8x64xf32>
    %c0_3 = arith.constant 0 : index
    %c0_4 = arith.constant 0 : index
    %4 = vector.load %arg3[%c0_3, %c0_4] : memref<1x64xf32, #tpu.memory_space<vmem>>, vector<1x64xf32>
    %5 = vector.broadcast %4 : vector<1x64xf32> to vector<8x64xf32>
    %6 = arith.addf %3, %5 : vector<8x64xf32>
    %cst_5 = arith.constant 0.000000e+00 : f32
    %7 = vector.broadcast %cst_5 : f32 to vector<8x64xf32>
    %8 = arith.maximumf %6, %7 : vector<8x64xf32>
    %9 = arith.truncf %8 : vector<8x64xf32> to vector<8x64xbf16>
    %c0_6 = arith.constant 0 : index
    %c0_7 = arith.constant 0 : index
    %10 = vector.load %arg4[%c0_6, %c0_7] : memref<64x64xbf16, #tpu.memory_space<vmem>>, vector<64x64xbf16>
    %cst_8 = arith.constant dense<0.000000e+00> : vector<8x64xf32>
    %11 = tpu.matmul %9, %10, %cst_8 {dimension_numbers = #tpu.dot_dimension_numbers<[1], [0], [0], [1], [0, 0, 1, 1], [], []>} : vector<8x64xbf16>, vector<64x64xbf16>, vector<8x64xf32> -> vector<8x64xf32>
    %c0_9 = arith.constant 0 : index
    %c0_10 = arith.constant 0 : index
    %12 = vector.load %arg5[%c0_9, %c0_10] : memref<1x64xf32, #tpu.memory_space<vmem>>, vector<1x64xf32>
    %13 = vector.broadcast %12 : vector<1x64xf32> to vector<8x64xf32>
    %14 = arith.addf %11, %13 : vector<8x64xf32>
    %cst_11 = arith.constant 0.000000e+00 : f32
    %15 = vector.broadcast %cst_11 : f32 to vector<8x64xf32>
    %16 = arith.maximumf %14, %15 : vector<8x64xf32>
    %17 = arith.truncf %16 : vector<8x64xf32> to vector<8x64xbf16>
    %c0_12 = arith.constant 0 : index
    %c0_13 = arith.constant 0 : index
    %18 = vector.load %arg6[%c0_12, %c0_13] : memref<64x1152xbf16, #tpu.memory_space<vmem>>, vector<64x1152xbf16>
    %cst_14 = arith.constant dense<0.000000e+00> : vector<8x1152xf32>
    %19 = tpu.matmul %17, %18, %cst_14 {dimension_numbers = #tpu.dot_dimension_numbers<[1], [0], [0], [1], [0, 0, 1, 1], [], []>} : vector<8x64xbf16>, vector<64x1152xbf16>, vector<8x1152xf32> -> vector<8x1152xf32>
    %c0_15 = arith.constant 0 : index
    %c0_16 = arith.constant 0 : index
    %20 = vector.load %arg7[%c0_15, %c0_16] : memref<1x1152xf32, #tpu.memory_space<vmem>>, vector<1x1152xf32>
    %21 = vector.broadcast %20 : vector<1x1152xf32> to vector<8x1152xf32>
    %22 = arith.addf %19, %21 : vector<8x1152xf32>
    %23 = arith.truncf %22 : vector<8x1152xf32> to vector<8x1152xbf16>
    %c0_17 = arith.constant 0 : index
    %c0_18 = arith.constant 0 : index
    %24 = vector.load %arg8[%c0_17, %c0_18] : memref<8x1152xbf16, #tpu.memory_space<vmem>>, vector<8x1152xbf16>
    tpu.vector_store %arg8[%c0_17, %c0_18], %23 {strides = array<i32>} : memref<8x1152xbf16, #tpu.memory_space<vmem>>, vector<8x1152xbf16>,
    return
  }
  func.func @transform_0(%arg0: i32) -> (i32, i32) {
    %c0_i32 = arith.constant 0 : i32
    %c0_i32_0 = arith.constant 0 : i32
    return %arg0, %c0_i32 : i32, i32
  }
  func.func @transform_1(%arg0: i32) -> (i32, i32) {
    %c0_i32 = arith.constant 0 : i32
    %c0_i32_0 = arith.constant 0 : i32
    %c0_i32_1 = arith.constant 0 : i32
    return %c0_i32, %c0_i32_0 : i32, i32
  }
  func.func @transform_2(%arg0: i32) -> (i32, i32) {
    %c0_i32 = arith.constant 0 : i32
    %c0_i32_0 = arith.constant 0 : i32
    %c0_i32_1 = arith.constant 0 : i32
    return %c0_i32, %c0_i32_0 : i32, i32
  }
  func.func @transform_3(%arg0: i32) -> (i32, i32) {
    %c0_i32 = arith.constant 0 : i32
    %c0_i32_0 = arith.constant 0 : i32
    %c0_i32_1 = arith.constant 0 : i32
    return %c0_i32, %c0_i32_0 : i32, i32
  }
  func.func @transform_4(%arg0: i32) -> (i32, i32) {
    %c0_i32 = arith.constant 0 : i32
    %c0_i32_0 = arith.constant 0 : i32
    %c0_i32_1 = arith.constant 0 : i32
    return %c0_i32, %c0_i32_0 : i32, i32
  }
  func.func @transform_5(%arg0: i32) -> (i32, i32) {
    %c0_i32 = arith.constant 0 : i32
    %c0_i32_0 = arith.constant 0 : i32
    %c0_i32_1 = arith.constant 0 : i32
    return %c0_i32, %c0_i32_0 : i32, i32
  }
  func.func @transform_6(%arg0: i32) -> (i32, i32) {
    %c0_i32 = arith.constant 0 : i32
    %c0_i32_0 = arith.constant 0 : i32
    %c0_i32_1 = arith.constant 0 : i32
    return %c0_i32, %c0_i32_0 : i32, i32
  }
  func.func @transform_7(%arg0: i32) -> (i32, i32) {
    %c0_i32 = arith.constant 0 : i32
    %c0_i32_0 = arith.constant 0 : i32
    return %arg0, %c0_i32 : i32, i32
  }
}

</mosaic_0001>

<llo_original>
// kernel: tpu_custom_call.1
$region0: #{tpu_custom_call.1}
  #allocation0 [shape = 'u32[]', space=smem, size = 0x4, offset = 0x4, fixed_abs, tag = 'smem constant byte address 0x4 - core index']
  #allocation1 [shape = 'u32[144,128]{1,0:T(1,128)}', space=vmem, size = 0x12000, scoped, tag = 'internal scratch']
  %s0 = inlined_call_operand.hbm [shape: f32[16,9], index: 0, kind: input, shape index: {}]
  %s1 = inlined_call_operand.hbm [shape: bf16[9,64], index: 1, kind: input, shape index: {}]
  %s2 = inlined_call_operand.vmem [shape: f32[1,64], index: 2, kind: input, shape index: {}]
  %s3 = inlined_call_operand.hbm [shape: bf16[64,64], index: 3, kind: input, shape index: {}]
  %s4 = inlined_call_operand.vmem [shape: f32[1,64], index: 4, kind: input, shape index: {}]
  %s5 = inlined_call_operand.hbm [shape: bf16[64,1152], index: 5, kind: input, shape index: {}]
  %s6 = inlined_call_operand.vmem [shape: f32[1,1152], index: 6, kind: input, shape index: {}]
  %s7 = inlined_call_operand.hbm [shape: bf16[16,1152], index: 7, kind: output, shape index: {}]
  %s8 = sld [smem:[#allocation0]]
  $region77: #{tpu_custom_call.1} parent=0
    _
  %s10 = ssub.s32 1, %s8
  %s11 = scalar_select 0, %s10, %s8
  $region1: #{tpu_custom_call.1} parent=0
    #allocation2 [shape = 'u8[8192]{0}', space=vmem, size = 0x2000, scoped, tag = 'input window, operand 0']
    #allocation3 [shape = 's32[2]{0}', space=sflag, size = 0x8, scoped, tag = 'scoped memory for tpu_custom_call.1']
    #allocation4 [shape = 's32[2]{0}', space=sflag, size = 0x8, scoped, tag = 'scoped memory for tpu_custom_call.1']
    #allocation5 [shape = 'u8[4096]{0}', space=vmem, size = 0x1000, scoped, tag = 'input window, operand 1, single buffered']
    #allocation6 [shape = 's32[1]{0}', space=sflag, size = 0x4, scoped, tag = 'scoped memory for tpu_custom_call.1']
    #allocation7 [shape = 'u8[16384]{0}', space=vmem, size = 0x4000, scoped, tag = 'input window, operand 3, single buffered']
    #allocation8 [shape = 'u8[147456]{0}', space=vmem, size = 0x24000, scoped, tag = 'input window, operand 5, single buffered']
    #allocation9 [shape = 's32[1]{0}', space=sflag, size = 0x4, scoped, tag = 'scoped memory for tpu_custom_call.1']
    #allocation10 [shape = 'u8[36864]{0}', space=vmem, size = 0x9000, scoped, tag = 'output window, operand 0']
    %12 = vsyncpa [#allocation3], 0
    %s13 = scalar_lea.sflag [#allocation3], 1
    %14 = vsyncpa %s13, 0
    %15 = vsyncpa [#allocation6], 0
    %16 = vsyncpa [#allocation9], 0
    %17 = vsyncpa [#allocation4], 0
    %s18 = scalar_lea.sflag [#allocation4], 1
    %19 = vsyncpa %s18, 0
    loop: start=0, step=1, limit=4
    $region2: #{tpu_custom_call.1} parent=1 // loop_pre_header
      _
    $region3: #{tpu_custom_call.1} parent=1 // loop_header
      %s21 = sphi 0, %s25
      %p22 = scmp.ge.s32.totalorder %s21, 4
      %s31 = sphi 0, %s33
      %s34 = sphi 0, %s31
      %s35 = sphi 0, %s34
      %s51 = sphi 0, %s35
      %s55 = sphi 0, %s55
      %s57 = sphi 0, %s55
      %s58 = sphi 0, %s57
      %s72 = sphi 0, %s58
      %s76 = sphi 0, %s76
      %s78 = sphi 0, %s76
      %s79 = sphi 0, %s78
      %s93 = sphi 0, %s79
      %s97 = sphi 0, %s97
      %s99 = sphi 0, %s97
      %s100 = sphi 0, %s99
      %s114 = sphi 0, %s100
      %s118 = sphi 0, %s118
      %s120 = sphi 0, %s118
      %s121 = sphi 0, %s120
      %s135 = sphi 0, %s121
      %s139 = sphi 0, %s139
      %s141 = sphi 0, %s139
      %s142 = sphi 0, %s141
      %s156 = sphi 0, %s142
      %s160 = sphi 0, %s160
      %s162 = sphi 0, %s160
      %s163 = sphi 0, %s162
      %s177 = sphi 0, %s163
      %s183 = sphi 0, %s185
      %s186 = sphi 0, %s183
      %s187 = sphi 0, %s186
      %s203 = sphi 0, %s187
    $region4: #{tpu_custom_call.1} parent=1 // loop_header_branch
      %24 = sbr.rel (%p22) target = $region8
    $region5: #{tpu_custom_call.1} parent=1 // loop_body
      %s26 = ssub.s32 %s21, 1
      %s27 = ssub.s32 %s21, 2
      %s28 = sadd.s32 %s21, 1
      %s29 = ssub.s32 %s21, %s28
      %p30 = scmp.eq.s32.totalorder %s29, 0
      %s32 = sadd.s32 %s31, 1
      %s33 = scalar_select %p30, %s31, %s32
      %p36 = pneg %p30
      %p37 = scmp.eq.s32.totalorder %s21, 1
      %p38 = por %p36, %p37
      %p39 = scmp.ne.s32.totalorder %s31, %s34
      %p40 = scmp.eq.s32.totalorder %s21, 0
      %p41 = por %p39, %p40
      %p42 = scmp.ne.s32.totalorder %s31, %s34
      %p43 = scmp.eq.s32.totalorder %s26, 1
      %p44 = por %p42, %p43
      %p45 = scmp.ne.s32.totalorder %s34, %s35
      %p46 = scmp.eq.s32.totalorder %s26, 0
      %p47 = por %p45, %p46
      %p48 = scmp.ne.s32.totalorder %s34, %s35
      %p49 = scmp.eq.s32.totalorder %s27, 1
      %p50 = por %p48, %p49
      %p52 = scmp.ne.s32.totalorder %s35, %s51
      %p53 = scmp.eq.s32.totalorder %s27, 0
      %p54 = por %p52, %p53
      %s56 = sadd.s32 %s55, 1
      %p59 = scmp.eq.s32.totalorder %s21, 1
      %p60 = scmp.ne.s32.totalorder %s55, %s57
      %p61 = scmp.eq.s32.totalorder %s21, 0
      %p62 = por %p60, %p61
      %p63 = scmp.ne.s32.totalorder %s55, %s57
      %p64 = scmp.eq.s32.totalorder %s26, 1
      %p65 = por %p63, %p64
      %p66 = scmp.ne.s32.totalorder %s57, %s58
      %p67 = scmp.eq.s32.totalorder %s26, 0
      %p68 = por %p66, %p67
      %p69 = scmp.ne.s32.totalorder %s57, %s58
      %p70 = scmp.eq.s32.totalorder %s27, 1
      %p71 = por %p69, %p70
      %p73 = scmp.ne.s32.totalorder %s58, %s72
      %p74 = scmp.eq.s32.totalorder %s27, 0
      %p75 = por %p73, %p74
      %s77 = sadd.s32 %s76, 1
      %p80 = scmp.eq.s32.totalorder %s21, 1
      %p81 = scmp.ne.s32.totalorder %s76, %s78
      %p82 = scmp.eq.s32.totalorder %s21, 0
      %p83 = por %p81, %p82
      %p84 = scmp.ne.s32.totalorder %s76, %s78
      %p85 = scmp.eq.s32.totalorder %s26, 1
      %p86 = por %p84, %p85
      %p87 = scmp.ne.s32.totalorder %s78, %s79
      %p88 = scmp.eq.s32.totalorder %s26, 0
      %p89 = por %p87, %p88
      %p90 = scmp.ne.s32.totalorder %s78, %s79
      %p91 = scmp.eq.s32.totalorder %s27, 1
      %p92 = por %p90, %p91
      %p94 = scmp.ne.s32.totalorder %s79, %s93
      %p95 = scmp.eq.s32.totalorder %s27, 0
      %p96 = por %p94, %p95
      %s98 = sadd.s32 %s97, 1
      %p101 = scmp.eq.s32.totalorder %s21, 1
      %p102 = scmp.ne.s32.totalorder %s97, %s99
      %p103 = scmp.eq.s32.totalorder %s21, 0
      %p104 = por %p102, %p103
      %p105 = scmp.ne.s32.totalorder %s97, %s99
      %p106 = scmp.eq.s32.totalorder %s26, 1
      %p107 = por %p105, %p106
      %p108 = scmp.ne.s32.totalorder %s99, %s100
      %p109 = scmp.eq.s32.totalorder %s26, 0
      %p110 = por %p108, %p109
      %p111 = scmp.ne.s32.totalorder %s99, %s100
      %p112 = scmp.eq.s32.totalorder %s27, 1
      %p113 = por %p111, %p112
      %p115 = scmp.ne.s32.totalorder %s100, %s114
      %p116 = scmp.eq.s32.totalorder %s27, 0
      %p117 = por %p115, %p116
      %s119 = sadd.s32 %s118, 1
      %p122 = scmp.eq.s32.totalorder %s21, 1
      %p123 = scmp.ne.s32.totalorder %s118, %s120
      %p124 = scmp.eq.s32.totalorder %s21, 0
      %p125 = por %p123, %p124
      %p126 = scmp.ne.s32.totalorder %s118, %s120
      %p127 = scmp.eq.s32.totalorder %s26, 1
      %p128 = por %p126, %p127
      %p129 = scmp.ne.s32.totalorder %s120, %s121
      %p130 = scmp.eq.s32.totalorder %s26, 0
      %p131 = por %p129, %p130
      %p132 = scmp.ne.s32.totalorder %s120, %s121
      %p133 = scmp.eq.s32.totalorder %s27, 1
      %p134 = por %p132, %p133
      %p136 = scmp.ne.s32.totalorder %s121, %s135
      %p137 = scmp.eq.s32.totalorder %s27, 0
      %p138 = por %p136, %p137
      %s140 = sadd.s32 %s139, 1
      %p143 = scmp.eq.s32.totalorder %s21, 1
      %p144 = scmp.ne.s32.totalorder %s139, %s141
      %p145 = scmp.eq.s32.totalorder %s21, 0
      %p146 = por %p144, %p145
      %p147 = scmp.ne.s32.totalorder %s139, %s141
      %p148 = scmp.eq.s32.totalorder %s26, 1
      %p149 = por %p147, %p148
      %p150 = scmp.ne.s32.totalorder %s141, %s142
      %p151 = scmp.eq.s32.totalorder %s26, 0
      %p152 = por %p150, %p151
      %p153 = scmp.ne.s32.totalorder %s141, %s142
      %p154 = scmp.eq.s32.totalorder %s27, 1
      %p155 = por %p153, %p154
      %p157 = scmp.ne.s32.totalorder %s142, %s156
      %p158 = scmp.eq.s32.totalorder %s27, 0
      %p159 = por %p157, %p158
      %s161 = sadd.s32 %s160, 1
      %p164 = scmp.eq.s32.totalorder %s21, 1
      %p165 = scmp.ne.s32.totalorder %s160, %s162
      %p166 = scmp.eq.s32.totalorder %s21, 0
      %p167 = por %p165, %p166
      %p168 = scmp.ne.s32.totalorder %s160, %s162
      %p169 = scmp.eq.s32.totalorder %s26, 1
      %p170 = por %p168, %p169
      %p171 = scmp.ne.s32.totalorder %s162, %s163
      %p172 = scmp.eq.s32.totalorder %s26, 0
      %p173 = por %p171, %p172
      %p174 = scmp.ne.s32.totalorder %s162, %s163
      %p175 = scmp.eq.s32.totalorder %s27, 1
      %p176 = por %p174, %p175
      %p178 = scmp.ne.s32.totalorder %s163, %s177
      %p179 = scmp.eq.s32.totalorder %s27, 0
      %p180 = por %p178, %p179
      %s181 = ssub.s32 %s21, %s28
      %p182 = scmp.eq.s32.totalorder %s181, 0
      %s184 = sadd.s32 %s183, 1
      %s185 = scalar_select %p182, %s183, %s184
      %p188 = pneg %p182
      %p189 = scmp.eq.s32.totalorder %s21, 1
      %p190 = por %p188, %p189
      %p191 = scmp.ne.s32.totalorder %s183, %s186
      %p192 = scmp.eq.s32.totalorder %s21, 0
      %p193 = por %p191, %p192
      %p194 = scmp.ne.s32.totalorder %s183, %s186
      %p195 = scmp.eq.s32.totalorder %s26, 1
      %p196 = por %p194, %p195
      %p197 = scmp.ne.s32.totalorder %s186, %s187
      %p198 = scmp.eq.s32.totalorder %s26, 0
      %p199 = por %p197, %p198
      %p200 = scmp.ne.s32.totalorder %s186, %s187
      %p201 = scmp.eq.s32.totalorder %s27, 1
      %p202 = por %p200, %p201
      %p204 = scmp.ne.s32.totalorder %s187, %s203
      %p205 = scmp.eq.s32.totalorder %s27, 0
      %p206 = por %p204, %p205
      %p207 = scmp.le.s32.totalorder 1, %s21
      %p208 = scmp.lt.s32.totalorder %s21, 3
      %p209 = pnand %p207, %p208
      %p210 = pneg %p209
      // Predicated region
      $region9: #{tpu_custom_call.1} parent=5 // pred_check
        _
      $region10: #{tpu_custom_call.1} parent=5 // pred_check_branch
        %212 = sbr.rel (%p209) target = $region12
      $region11: #{tpu_custom_call.1} parent=5 // pred_region
        %s213 = ssub.s32 %s21, 1
        // Predicated region
        $region13: #{tpu_custom_call.1} parent=11 // pred_check
          %p214 = pneg %p68
        $region14: #{tpu_custom_call.1} parent=11 // pred_check_branch
          %216 = sbr.rel (%p214) target = $region16
        $region15: #{tpu_custom_call.1} parent=11 // pred_region
          %s218 = ssub.s32 128, 128
          %219 = vsyncadd [#allocation6], %s218
          %s220 = sshll.u32 [#allocation5], 4
          %s221 = int_to_ptr.vmem [resolvable:$true] %s220
          %226 = dma.hbm_to_vmem [thread:$0]  %s1, 128, %s221, [#allocation6], 64, 64, 4
        $region16: #{tpu_custom_call.1} parent=11 // pred_fallthru
          _
        // Predicated region
        $region17: #{tpu_custom_call.1} parent=11 // pred_check
          %p227 = pneg %p89
        $region18: #{tpu_custom_call.1} parent=11 // pred_check_branch
          %229 = sbr.rel (%p227) target = $region20
        $region19: #{tpu_custom_call.1} parent=11 // pred_region
          _
        $region20: #{tpu_custom_call.1} parent=11 // pred_fallthru
          _
        // Predicated region
        $region21: #{tpu_custom_call.1} parent=11 // pred_check
          %p230 = pneg %p110
        $region22: #{tpu_custom_call.1} parent=11 // pred_check_branch
          %232 = sbr.rel (%p230) target = $region24
        $region23: #{tpu_custom_call.1} parent=11 // pred_region
          %s234 = ssub.s32 512, 512
          %235 = vsyncadd [#allocation6], %s234
          %s236 = sshll.u32 [#allocation7], 4
          %s237 = int_to_ptr.vmem [resolvable:$true] %s236
          %242 = dma.hbm_to_vmem [thread:$0]  %s3, 512, %s237, [#allocation6], 64, 64, 4
        $region24: #{tpu_custom_call.1} parent=11 // pred_fallthru
          _
        // Predicated region
        $region25: #{tpu_custom_call.1} parent=11 // pred_check
          %p243 = pneg %p131
        $region26: #{tpu_custom_call.1} parent=11 // pred_check_branch
          %245 = sbr.rel (%p243) target = $region28
        $region27: #{tpu_custom_call.1} parent=11 // pred_region
          _
        $region28: #{tpu_custom_call.1} parent=11 // pred_fallthru
          _
        // Predicated region
        $region29: #{tpu_custom_call.1} parent=11 // pred_check
          %p246 = pneg %p152
        $region30: #{tpu_custom_call.1} parent=11 // pred_check_branch
          %248 = sbr.rel (%p246) target = $region32
        $region31: #{tpu_custom_call.1} parent=11 // pred_region
          %s250 = ssub.s32 4608, 4608
          %251 = vsyncadd [#allocation9], %s250
          %s252 = sshll.u32 [#allocation8], 4
          %s253 = int_to_ptr.vmem [resolvable:$true] %s252
          %258 = dma.hbm_to_vmem [thread:$0]  %s5, 4608, %s253, [#allocation9], 576, 576, 36
        $region32: #{tpu_custom_call.1} parent=11 // pred_fallthru
          _
        // Predicated region
        $region33: #{tpu_custom_call.1} parent=11 // pred_check
          %p259 = pneg %p173
        $region34: #{tpu_custom_call.1} parent=11 // pred_check_branch
          %261 = sbr.rel (%p259) target = $region36
        $region35: #{tpu_custom_call.1} parent=11 // pred_region
          _
        $region36: #{tpu_custom_call.1} parent=11 // pred_fallthru
          _
      $region12: #{tpu_custom_call.1} parent=5 // pred_fallthru
        _
      %p262 = scmp.lt.s32.totalorder %s21, 2
      // Predicated region
      $region37: #{tpu_custom_call.1} parent=5 // pred_check
        %p263 = pneg %p262
      $region38: #{tpu_custom_call.1} parent=5 // pred_check_branch
        %265 = sbr.rel (%p263) target = $region40
      $region39: #{tpu_custom_call.1} parent=5 // pred_region
        // Predicated region
        $region41: #{tpu_custom_call.1} parent=39 // pred_check
          %p266 = pneg %p41
        $region42: #{tpu_custom_call.1} parent=39 // pred_check_branch
          %268 = sbr.rel (%p266) target = $region44
        $region43: #{tpu_custom_call.1} parent=39 // pred_region
          %s269 = sand.u32 %s31, 1
          %s270 = scalar_lea.sflag [#allocation3], %s269
          %s271 = sand.u32 %s31, 1
          %s272 = smul.addr %s271, 8
          %s273 = scalar_lea.vmem [#allocation2], %s272
          %s275 = ssub.s32 128, 128
          %276 = vsyncadd %s270, %s275
          %s277 = smul.addr %s21, 128
          %s278 = scalar_lea.hbm %s0, %s277
          %s280 = sshll.u32 %s273, 4
          %s281 = int_to_ptr.vmem [resolvable:$true] %s280
          %283 = dma.hbm_to_vmem [thread:$0]  %s278, 128, %s281, %s270
        $region44: #{tpu_custom_call.1} parent=39 // pred_fallthru
          _
      $region40: #{tpu_custom_call.1} parent=5 // pred_fallthru
        _
      %p284 = scmp.le.s32.totalorder 1, %s21
      %p285 = scmp.lt.s32.totalorder %s21, 3
      %p286 = pnand %p284, %p285
      %p287 = pneg %p286
      // Predicated region
      $region45: #{tpu_custom_call.1} parent=5 // pred_check
        _
      $region46: #{tpu_custom_call.1} parent=5 // pred_check_branch
        %289 = sbr.rel (%p286) target = $region48
      $region47: #{tpu_custom_call.1} parent=5 // pred_region
        %s290 = ssub.s32 %s21, 1
        %s291 = sand.u32 %s34, 1
        %s292 = scalar_lea.sflag [#allocation3], %s291
        %s293 = sand.u32 %s34, 1
        %s294 = smul.addr %s293, 8
        %s295 = scalar_lea.vmem [#allocation2], %s294
        // Predicated region
        $region49: #{tpu_custom_call.1} parent=47 // pred_check
          %p296 = pneg %p47
        $region50: #{tpu_custom_call.1} parent=47 // pred_check_branch
          %298 = sbr.rel (%p296) target = $region52
        $region51: #{tpu_custom_call.1} parent=47 // pred_region
          %299 = dma.done %s292, 128
        $region52: #{tpu_custom_call.1} parent=47 // pred_fallthru
          _
        // Predicated region
        $region53: #{tpu_custom_call.1} parent=47 // pred_check
          %p300 = pneg %p68
        $region54: #{tpu_custom_call.1} parent=47 // pred_check_branch
          %302 = sbr.rel (%p300) target = $region56
        $region55: #{tpu_custom_call.1} parent=47 // pred_region
          %303 = dma.done [#allocation6], 128
        $region56: #{tpu_custom_call.1} parent=47 // pred_fallthru
          _
        // Predicated region
        $region57: #{tpu_custom_call.1} parent=47 // pred_check
          %p304 = pneg %p110
        $region58: #{tpu_custom_call.1} parent=47 // pred_check_branch
          %306 = sbr.rel (%p304) target = $region60
        $region59: #{tpu_custom_call.1} parent=47 // pred_region
          %307 = dma.done [#allocation6], 512
        $region60: #{tpu_custom_call.1} parent=47 // pred_fallthru
          _
        // Predicated region
        $region61: #{tpu_custom_call.1} parent=47 // pred_check
          %p308 = pneg %p152
        $region62: #{tpu_custom_call.1} parent=47 // pred_check_branch
          %310 = sbr.rel (%p308) target = $region64
        $region63: #{tpu_custom_call.1} parent=47 // pred_region
          %311 = dma.done [#allocation9], 4608
        $region64: #{tpu_custom_call.1} parent=47 // pred_fallthru
          _
        %s312 = sand.u32 %s34, 1
        %s313 = scalar_lea.sflag [#allocation3], %s312
        %s314 = sand.u32 %s34, 1
        %s315 = smul.addr %s314, 8
        %s316 = scalar_lea.vmem [#allocation2], %s315
        %p317 = pneg %p47
        %p318 = pneg %p44
        %p319 = pneg %p68
        %p320 = pneg %p65
        %p321 = pneg %p89
        %p322 = pneg %p86
        %p323 = pneg %p110
        %p324 = pneg %p107
        %p325 = pneg %p131
        %p326 = pneg %p128
        %p327 = pneg %p152
        %p328 = pneg %p149
        %p329 = pneg %p173
        %p330 = pneg %p170
        %p331 = pneg %p199
        %p332 = pneg %p196
        %s333 = sand.u32 %s186, 1
        %s334 = scalar_lea.sflag [#allocation4], %s333
        %s335 = sand.u32 %s186, 1
        %s336 = smul.addr %s335, 36
        %s337 = scalar_lea.vmem [#allocation10], %s336
        %v339 = vld [vmem:[%s295] sm:$0xff]
        %v340 = vpack.c.bf16 %v339, %v339
        %v341 = vld [vmem:[#allocation5] sm:$0xf]
        %v342 = vld [vmem:[#allocation5 + $0x4] sm:$0x1]
        %v343 = vld [vmem:[%s2] sm:$0x1]
        %v345 = vlaneseq
        %v346 = vshrl.u32 %v345, 7
        %v347 = vsub.s32 0, %v346
        %v348 = vrot.slane %v343, %v347
        %v352 = vunpack.c.l.b16 %v341
        %v353 = vunpack.c.l.b16 %v342
        %v354 = vpack.c.b16 %v353, %v352
        %vm355 = vcmask 72704
        %v357 = vsel %vm355, %v340, 0
        %vm359 = vcmask 1043456
        %vm360 = vcmask 1044480
        %v361 = vsel %vm359, 4294967295, 65535
        %v362 = vsel %vm360, %v361, 0
        %v364 = vand.u32 %v354, %v362
        %366 = vmatprep.subr.bf16.mxu0 0
        %367 = vmatpush1.bf16.msra.mxu0 %v364
        %368 = vmatprep.subr.bf16.mxu0 0
        %369 = vmatpush1.bf16.msra.mxu0 0
        %370 = vmatprep.subr.bf16.mxu0 0
        %371 = vmatpush1.bf16.msra.mxu0 0
        %372 = vmatprep.subr.bf16.mxu0 0
        %373 = vmatpush1.bf16.msra.mxu0 0
        %374 = vmatprep.subr.bf16.mxu0 0
        %375 = vmatpush1.bf16.msra.mxu0 0
        %376 = vmatprep.subr.bf16.mxu0 0
        %377 = vmatpush1.bf16.msra.mxu0 0
        %378 = vmatprep.subr.bf16.mxu0 0
        %379 = vmatpush1.bf16.msra.mxu0 0
        %380 = vmatprep.subr.bf16.mxu0 0
        %381 = vmatpush1.bf16.msra.mxu0 0
        %382 = vmatprep.subr.bf16.mxu0 0
        %383 = vmatpush1.bf16.msra.mxu0 0
        %384 = vmatprep.subr.bf16.mxu0 0
        %385 = vmatpush1.bf16.msra.mxu0 0
        %386 = vmatprep.subr.bf16.mxu0 0
        %387 = vmatpush1.bf16.msra.mxu0 0
        %388 = vmatprep.subr.bf16.mxu0 0
        %389 = vmatpush1.bf16.msra.mxu0 0
        %390 = vmatprep.subr.bf16.mxu0 0
        %391 = vmatpush1.bf16.msra.mxu0 0
        %392 = vmatprep.subr.bf16.mxu0 0
        %393 = vmatpush1.bf16.msra.mxu0 0
        %394 = vmatprep.subr.bf16.mxu0 0
        %395 = vmatpush1.bf16.msra.mxu0 0
        %396 = vmatprep.subr.bf16.mxu0 0
        %397 = vmatpush1.bf16.msra.mxu0 0
        %398 = vmatprep.mubr.bf16.mxu0 0
        %399 = vmatmul.mubr.bf16.gmra.mrb[0].mxu0 %v357
        %v400 = vpop.f32.mrb[0].mxu0
        %v401 = vadd.f32 %v348, %v400
        %v402 = vpop.f32.mrb[0].mxu0
        %v403 = vpop.f32.mrb[0].mxu0
        %v404 = vpop.f32.mrb[0].mxu0
        %405 = vdwg.mxu0
        %v406 = vmax.f32 %v401, 0.0
        %v407 = vpack.c.bf16 %v406, %v406
        %v408 = vld [vmem:[#allocation7] sm:$0xf]
        %v409 = vld [vmem:[#allocation7 + $0x4] sm:$0xf]
        %v410 = vld [vmem:[#allocation7 + $0x8] sm:$0xf]
        %v411 = vld [vmem:[#allocation7 + $0xc] sm:$0xf]
        %v412 = vld [vmem:[#allocation7 + $0x10] sm:$0xf]
        %v413 = vld [vmem:[#allocation7 + $0x14] sm:$0xf]
        %v414 = vld [vmem:[#allocation7 + $0x18] sm:$0xf]
        %v415 = vld [vmem:[#allocation7 + $0x1c] sm:$0xf]
        %v416 = vld [vmem:[%s4] sm:$0x1]
        %v418 = vlaneseq
        %v419 = vshrl.u32 %v418, 7
        %v420 = vsub.s32 0, %v419
        %v421 = vrot.slane %v416, %v420
        %v431 = vunpack.c.l.b16 %v408
        %v432 = vunpack.c.l.b16 %v409
        %v433 = vunpack.c.l.b16 %v410
        %v434 = vunpack.c.l.b16 %v411
        %v435 = vunpack.c.l.b16 %v412
        %v436 = vunpack.c.l.b16 %v413
        %v437 = vunpack.c.l.b16 %v414
        %v438 = vunpack.c.l.b16 %v415
        %v439 = vpack.c.b16 %v432, %v431
        %v440 = vpack.c.b16 %v434, %v433
        %v441 = vpack.c.b16 %v436, %v435
        %v442 = vpack.c.b16 %v438, %v437
        %vm447 = vcmask 523264
        %v449 = vsel %vm447, %v407, 0
        %451 = vmatprep.subr.bf16.mxu0 0
        %452 = vmatpush1.bf16.msra.mxu0 %v439
        %453 = vmatprep.subr.bf16.mxu0 0
        %454 = vmatpush1.bf16.msra.mxu0 %v440
        %455 = vmatprep.subr.bf16.mxu0 0
        %456 = vmatpush1.bf16.msra.mxu0 %v441
        %457 = vmatprep.subr.bf16.mxu0 0
        %458 = vmatpush1.bf16.msra.mxu0 %v442
        %459 = vmatprep.subr.bf16.mxu0 0
        %460 = vmatpush1.bf16.msra.mxu0 0
        %461 = vmatprep.subr.bf16.mxu0 0
        %462 = vmatpush1.bf16.msra.mxu0 0
        %463 = vmatprep.subr.bf16.mxu0 0
        %464 = vmatpush1.bf16.msra.mxu0 0
        %465 = vmatprep.subr.bf16.mxu0 0
        %466 = vmatpush1.bf16.msra.mxu0 0
        %467 = vmatprep.subr.bf16.mxu0 0
        %468 = vmatpush1.bf16.msra.mxu0 0
        %469 = vmatprep.subr.bf16.mxu0 0
        %470 = vmatpush1.bf16.msra.mxu0 0
        %471 = vmatprep.subr.bf16.mxu0 0
        %472 = vmatpush1.bf16.msra.mxu0 0
        %473 = vmatprep.subr.bf16.mxu0 0
        %474 = vmatpush1.bf16.msra.mxu0 0
        %475 = vmatprep.subr.bf16.mxu0 0
        %476 = vmatpush1.bf16.msra.mxu0 0
        %477 = vmatprep.subr.bf16.mxu0 0
        %478 = vmatpush1.bf16.msra.mxu0 0
        %479 = vmatprep.subr.bf16.mxu0 0
        %480 = vmatpush1.bf16.msra.mxu0 0
        %481 = vmatprep.subr.bf16.mxu0 0
        %482 = vmatpush1.bf16.msra.mxu0 0
        %483 = vmatprep.mubr.bf16.mxu0 0
        %484 = vmatmul.mubr.bf16.gmra.mrb[0].mxu0 %v449
        %v485 = vpop.f32.mrb[0].mxu0
        %v486 = vadd.f32 %v421, %v485
        %v487 = vpop.f32.mrb[0].mxu0
        %v488 = vpop.f32.mrb[0].mxu0
        %v489 = vpop.f32.mrb[0].mxu0
        %490 = vdwg.mxu0
        %v491 = vmax.f32 %v486, 0.0
        %v492 = vpack.c.bf16 %v491, %v491
        %v493 = vld [vmem:[#allocation8] sm:$0xff]
        %v494 = vld [vmem:[#allocation8 + $0x8] sm:$0xff]
        %v495 = vld [vmem:[#allocation8 + $0x10] sm:$0xff]
        %v496 = vld [vmem:[#allocation8 + $0x18] sm:$0xff]
        %v497 = vld [vmem:[#allocation8 + $0x20] sm:$0xf]
        %v498 = vld [vmem:[#allocation8 + $0x24] sm:$0xff]
        %v499 = vld [vmem:[#allocation8 + $0x2c] sm:$0xff]
        %v500 = vld [vmem:[#allocation8 + $0x34] sm:$0xff]
        %v501 = vld [vmem:[#allocation8 + $0x3c] sm:$0xff]
        %v502 = vld [vmem:[#allocation8 + $0x44] sm:$0xf]
        %v503 = vld [vmem:[#allocation8 + $0x48] sm:$0xff]
        %v504 = vld [vmem:[#allocation8 + $0x50] sm:$0xff]
        %v505 = vld [vmem:[#allocation8 + $0x58] sm:$0xff]
        %v506 = vld [vmem:[#allocation8 + $0x60] sm:$0xff]
        %v507 = vld [vmem:[#allocation8 + $0x68] sm:$0xf]
        %v508 = vld [vmem:[#allocation8 + $0x6c] sm:$0xff]
        %v509 = vld [vmem:[#allocation8 + $0x74] sm:$0xff]
        %v510 = vld [vmem:[#allocation8 + $0x7c] sm:$0xff]
        %v511 = vld [vmem:[#allocation8 + $0x84] sm:$0xff]
        %v512 = vld [vmem:[#allocation8 + $0x8c] sm:$0xf]
        %v513 = vld [vmem:[#allocation8 + $0x90] sm:$0xff]
        %v514 = vld [vmem:[#allocation8 + $0x98] sm:$0xff]
        %v515 = vld [vmem:[#allocation8 + $0xa0] sm:$0xff]
        %v516 = vld [vmem:[#allocation8 + $0xa8] sm:$0xff]
        %v517 = vld [vmem:[#allocation8 + $0xb0] sm:$0xf]
        %v518 = vld [vmem:[#allocation8 + $0xb4] sm:$0xff]
        %v519 = vld [vmem:[#allocation8 + $0xbc] sm:$0xff]
        %v520 = vld [vmem:[#allocation8 + $0xc4] sm:$0xff]
        %v521 = vld [vmem:[#allocation8 + $0xcc] sm:$0xff]
        %v522 = vld [vmem:[#allocation8 + $0xd4] sm:$0xf]
        %v523 = vld [vmem:[#allocation8 + $0xd8] sm:$0xff]
        %v524 = vld [vmem:[#allocation8 + $0xe0] sm:$0xff]
        %v525 = vld [vmem:[#allocation8 + $0xe8] sm:$0xff]
        %v526 = vld [vmem:[#allocation8 + $0xf0] sm:$0xff]
        %v527 = vld [vmem:[#allocation8 + $0xf8] sm:$0xf]
        %v528 = vld [vmem:[#allocation8 + $0xfc] sm:$0xff]
        %v529 = vld [vmem:[#allocation8 + $0x104] sm:$0xff]
        %v530 = vld [vmem:[#allocation8 + $0x10c] sm:$0xff]
        %v531 = vld [vmem:[#allocation8 + $0x114] sm:$0xff]
        %v532 = vld [vmem:[#allocation8 + $0x11c] sm:$0xf]
        %v533 = vld [vmem:[%s6] sm:$0xff]
        %v534 = vld [vmem:[%s6 + $0x8] sm:$0x1]
        %v537 = vlaneseq
        %v538 = vshrl.u32 %v537, 7
        %v539 = vsub.s32 0, %v538
        %v540 = vrot.slane %v533, %v539
        %v541 = vlaneseq
        %v542 = vshrl.u32 %v541, 7
        %v543 = vsub.s32 1, %v542
        %v544 = vrot.slane %v533, %v543
        %v545 = vlaneseq
        %v546 = vshrl.u32 %v545, 7
        %v547 = vsub.s32 2, %v546
        %v548 = vrot.slane %v533, %v547
        %v549 = vlaneseq
        %v550 = vshrl.u32 %v549, 7
        %v551 = vsub.s32 3, %v550
        %v552 = vrot.slane %v533, %v551
        %v553 = vlaneseq
        %v554 = vshrl.u32 %v553, 7
        %v555 = vsub.s32 4, %v554
        %v556 = vrot.slane %v533, %v555
        %v557 = vlaneseq
        %v558 = vshrl.u32 %v557, 7
        %v559 = vsub.s32 5, %v558
        %v560 = vrot.slane %v533, %v559
        %v561 = vlaneseq
        %v562 = vshrl.u32 %v561, 7
        %v563 = vsub.s32 6, %v562
        %v564 = vrot.slane %v533, %v563
        %v565 = vlaneseq
        %v566 = vshrl.u32 %v565, 7
        %v567 = vsub.s32 7, %v566
        %v568 = vrot.slane %v533, %v567
        %v569 = vlaneseq
        %v570 = vshrl.u32 %v569, 7
        %v571 = vsub.s32 0, %v570
        %v572 = vrot.slane %v534, %v571
        %v622 = vunpack.c.l.b16 %v493
        %v623 = vunpack.c.h.b16 %v493
        %v624 = vunpack.c.l.b16 %v494
        %v625 = vunpack.c.h.b16 %v494
        %v626 = vunpack.c.l.b16 %v495
        %v627 = vunpack.c.h.b16 %v495
        %v628 = vunpack.c.l.b16 %v496
        %v629 = vunpack.c.h.b16 %v496
        %v630 = vunpack.c.l.b16 %v497
        %v631 = vunpack.c.l.b16 %v498
        %v632 = vunpack.c.h.b16 %v498
        %v633 = vunpack.c.l.b16 %v499
        %v634 = vunpack.c.h.b16 %v499
        %v635 = vunpack.c.l.b16 %v500
        %v636 = vunpack.c.h.b16 %v500
        %v637 = vunpack.c.l.b16 %v501
        %v638 = vunpack.c.h.b16 %v501
        %v639 = vunpack.c.l.b16 %v502
        %v640 = vunpack.c.l.b16 %v503
        %v641 = vunpack.c.h.b16 %v503
        %v642 = vunpack.c.l.b16 %v504
        %v643 = vunpack.c.h.b16 %v504
        %v644 = vunpack.c.l.b16 %v505
        %v645 = vunpack.c.h.b16 %v505
        %v646 = vunpack.c.l.b16 %v506
        %v647 = vunpack.c.h.b16 %v506
        %v648 = vunpack.c.l.b16 %v507
        %v649 = vunpack.c.l.b16 %v508
        %v650 = vunpack.c.h.b16 %v508
        %v651 = vunpack.c.l.b16 %v509
        %v652 = vunpack.c.h.b16 %v509
        %v653 = vunpack.c.l.b16 %v510
        %v654 = vunpack.c.h.b16 %v510
        %v655 = vunpack.c.l.b16 %v511
        %v656 = vunpack.c.h.b16 %v511
        %v657 = vunpack.c.l.b16 %v512
        %v658 = vunpack.c.l.b16 %v513
        %v659 = vunpack.c.h.b16 %v513
        %v660 = vunpack.c.l.b16 %v514
        %v661 = vunpack.c.h.b16 %v514
        %v662 = vunpack.c.l.b16 %v515
        %v663 = vunpack.c.h.b16 %v515
        %v664 = vunpack.c.l.b16 %v516
        %v665 = vunpack.c.h.b16 %v516
        %v666 = vunpack.c.l.b16 %v517
        %v667 = vunpack.c.l.b16 %v518
        %v668 = vunpack.c.h.b16 %v518
        %v669 = vunpack.c.l.b16 %v519
        %v670 = vunpack.c.h.b16 %v519
        %v671 = vunpack.c.l.b16 %v520
        %v672 = vunpack.c.h.b16 %v520
        %v673 = vunpack.c.l.b16 %v521
        %v674 = vunpack.c.h.b16 %v521
        %v675 = vunpack.c.l.b16 %v522
        %v676 = vunpack.c.l.b16 %v523
        %v677 = vunpack.c.h.b16 %v523
        %v678 = vunpack.c.l.b16 %v524
        %v679 = vunpack.c.h.b16 %v524
        %v680 = vunpack.c.l.b16 %v525
        %v681 = vunpack.c.h.b16 %v525
        %v682 = vunpack.c.l.b16 %v526
        %v683 = vunpack.c.h.b16 %v526
        %v684 = vunpack.c.l.b16 %v527
        %v685 = vunpack.c.l.b16 %v528
        %v686 = vunpack.c.h.b16 %v528
        %v687 = vunpack.c.l.b16 %v529
        %v688 = vunpack.c.h.b16 %v529
        %v689 = vunpack.c.l.b16 %v530
        %v690 = vunpack.c.h.b16 %v530
        %v691 = vunpack.c.l.b16 %v531
        %v692 = vunpack.c.h.b16 %v531
        %v693 = vunpack.c.l.b16 %v532
        %v694 = vpack.c.b16 %v631, %v622
        %v695 = vpack.c.b16 %v632, %v623
        %v696 = vpack.c.b16 %v633, %v624
        %v697 = vpack.c.b16 %v634, %v625
        %v698 = vpack.c.b16 %v635, %v626
        %v699 = vpack.c.b16 %v636, %v627
        %v700 = vpack.c.b16 %v637, %v628
        %v701 = vpack.c.b16 %v638, %v629
        %v702 = vpack.c.b16 %v639, %v630
        %v703 = vpack.c.b16 %v649, %v640
        %v704 = vpack.c.b16 %v650, %v641
        %v705 = vpack.c.b16 %v651, %v642
        %v706 = vpack.c.b16 %v652, %v643
        %v707 = vpack.c.b16 %v653, %v644
        %v708 = vpack.c.b16 %v654, %v645
        %v709 = vpack.c.b16 %v655, %v646
        %v710 = vpack.c.b16 %v656, %v647
        %v711 = vpack.c.b16 %v657, %v648
        %v712 = vpack.c.b16 %v667, %v658
        %v713 = vpack.c.b16 %v668, %v659
        %v714 = vpack.c.b16 %v669, %v660
        %v715 = vpack.c.b16 %v670, %v661
        %v716 = vpack.c.b16 %v671, %v662
        %v717 = vpack.c.b16 %v672, %v663
        %v718 = vpack.c.b16 %v673, %v664
        %v719 = vpack.c.b16 %v674, %v665
        %v720 = vpack.c.b16 %v675, %v666
        %v721 = vpack.c.b16 %v685, %v676
        %v722 = vpack.c.b16 %v686, %v677
        %v723 = vpack.c.b16 %v687, %v678
        %v724 = vpack.c.b16 %v688, %v679
        %v725 = vpack.c.b16 %v689, %v680
        %v726 = vpack.c.b16 %v690, %v681
        %v727 = vpack.c.b16 %v691, %v682
        %v728 = vpack.c.b16 %v692, %v683
        %v729 = vpack.c.b16 %v693, %v684
        %v767 = vsel %vm447, %v492, 0
        %769 = vmatprep.subr.bf16.mxu0 %v695
        %770 = vmatpush1.bf16.msra.mxu0 %v694
        %771 = vmatprep.subr.bf16.mxu0 %v704
        %772 = vmatpush1.bf16.msra.mxu0 %v703
        %773 = vmatprep.subr.bf16.mxu0 %v713
        %774 = vmatpush1.bf16.msra.mxu0 %v712
        %775 = vmatprep.subr.bf16.mxu0 %v722
        %776 = vmatpush1.bf16.msra.mxu0 %v721
        %777 = vmatprep.subr.bf16.mxu0 0
        %778 = vmatpush1.bf16.msra.mxu0 0
        %779 = vmatprep.subr.bf16.mxu0 0
        %780 = vmatpush1.bf16.msra.mxu0 0
        %781 = vmatprep.subr.bf16.mxu0 0
        %782 = vmatpush1.bf16.msra.mxu0 0
        %783 = vmatprep.subr.bf16.mxu0 0
        %784 = vmatpush1.bf16.msra.mxu0 0
        %785 = vmatprep.subr.bf16.mxu0 0
        %786 = vmatpush1.bf16.msra.mxu0 0
        %787 = vmatprep.subr.bf16.mxu0 0
        %788 = vmatpush1.bf16.msra.mxu0 0
        %789 = vmatprep.subr.bf16.mxu0 0
        %790 = vmatpush1.bf16.msra.mxu0 0
        %791 = vmatprep.subr.bf16.mxu0 0
        %792 = vmatpush1.bf16.msra.mxu0 0
        %793 = vmatprep.subr.bf16.mxu0 0
        %794 = vmatpush1.bf16.msra.mxu0 0
        %795 = vmatprep.subr.bf16.mxu0 0
        %796 = vmatpush1.bf16.msra.mxu0 0
        %797 = vmatprep.subr.bf16.mxu0 0
        %798 = vmatpush1.bf16.msra.mxu0 0
        %799 = vmatprep.subr.bf16.mxu0 0
        %800 = vmatpush1.bf16.msra.mxu0 0
        %801 = vmatprep.mubr.bf16.mxu0 0
        %802 = vmatmul.mubr.bf16.gmra.mrb[0].mxu0 %v767
        %v803 = vpop.f32.mrb[0].mxu0
        %v804 = vadd.f32 %v540, %v803
        %v805 = vpop.f32.mrb[0].mxu0
        %v806 = vadd.f32 %v544, %v805
        %v807 = vpop.f32.mrb[0].mxu0
        %v808 = vpop.f32.mrb[0].mxu0
        %809 = vdwg.mxu0
        %810 = vmatprep.subr.bf16.mxu0 %v697
        %811 = vmatpush1.bf16.msra.mxu0 %v696
        %812 = vmatprep.subr.bf16.mxu0 %v706
        %813 = vmatpush1.bf16.msra.mxu0 %v705
        %814 = vmatprep.subr.bf16.mxu0 %v715
        %815 = vmatpush1.bf16.msra.mxu0 %v714
        %816 = vmatprep.subr.bf16.mxu0 %v724
        %817 = vmatpush1.bf16.msra.mxu0 %v723
        %818 = vmatprep.subr.bf16.mxu0 0
        %819 = vmatpush1.bf16.msra.mxu0 0
        %820 = vmatprep.subr.bf16.mxu0 0
        %821 = vmatpush1.bf16.msra.mxu0 0
        %822 = vmatprep.subr.bf16.mxu0 0
        %823 = vmatpush1.bf16.msra.mxu0 0
        %824 = vmatprep.subr.bf16.mxu0 0
        %825 = vmatpush1.bf16.msra.mxu0 0
        %826 = vmatprep.subr.bf16.mxu0 0
        %827 = vmatpush1.bf16.msra.mxu0 0
        %828 = vmatprep.subr.bf16.mxu0 0
        %829 = vmatpush1.bf16.msra.mxu0 0
        %830 = vmatprep.subr.bf16.mxu0 0
        %831 = vmatpush1.bf16.msra.mxu0 0
        %832 = vmatprep.subr.bf16.mxu0 0
        %833 = vmatpush1.bf16.msra.mxu0 0
        %834 = vmatprep.subr.bf16.mxu0 0
        %835 = vmatpush1.bf16.msra.mxu0 0
        %836 = vmatprep.subr.bf16.mxu0 0
        %837 = vmatpush1.bf16.msra.mxu0 0
        %838 = vmatprep.subr.bf16.mxu0 0
        %839 = vmatpush1.bf16.msra.mxu0 0
        %840 = vmatprep.subr.bf16.mxu0 0
        %841 = vmatpush1.bf16.msra.mxu0 0
        %842 = vmatprep.mubr.bf16.mxu0 0
        %843 = vmatmul.mubr.bf16.gmra.mrb[0].mxu0 %v767
        %v844 = vpop.f32.mrb[0].mxu0
        %v845 = vadd.f32 %v548, %v844
        %v846 = vpop.f32.mrb[0].mxu0
        %v847 = vadd.f32 %v552, %v846
        %v848 = vpop.f32.mrb[0].mxu0
        %v849 = vpop.f32.mrb[0].mxu0
        %850 = vdwg.mxu0
        %851 = vmatprep.subr.bf16.mxu0 %v699
        %852 = vmatpush1.bf16.msra.mxu0 %v698
        %853 = vmatprep.subr.bf16.mxu0 %v708
        %854 = vmatpush1.bf16.msra.mxu0 %v707
        %855 = vmatprep.subr.bf16.mxu0 %v717
        %856 = vmatpush1.bf16.msra.mxu0 %v716
        %857 = vmatprep.subr.bf16.mxu0 %v726
        %858 = vmatpush1.bf16.msra.mxu0 %v725
        %859 = vmatprep.subr.bf16.mxu0 0
        %860 = vmatpush1.bf16.msra.mxu0 0
        %861 = vmatprep.subr.bf16.mxu0 0
        %862 = vmatpush1.bf16.msra.mxu0 0
        %863 = vmatprep.subr.bf16.mxu0 0
        %864 = vmatpush1.bf16.msra.mxu0 0
        %865 = vmatprep.subr.bf16.mxu0 0
        %866 = vmatpush1.bf16.msra.mxu0 0
        %867 = vmatprep.subr.bf16.mxu0 0
        %868 = vmatpush1.bf16.msra.mxu0 0
        %869 = vmatprep.subr.bf16.mxu0 0
        %870 = vmatpush1.bf16.msra.mxu0 0
        %871 = vmatprep.subr.bf16.mxu0 0
        %872 = vmatpush1.bf16.msra.mxu0 0
        %873 = vmatprep.subr.bf16.mxu0 0
        %874 = vmatpush1.bf16.msra.mxu0 0
        %875 = vmatprep.subr.bf16.mxu0 0
        %876 = vmatpush1.bf16.msra.mxu0 0
        %877 = vmatprep.subr.bf16.mxu0 0
        %878 = vmatpush1.bf16.msra.mxu0 0
        %879 = vmatprep.subr.bf16.mxu0 0
        %880 = vmatpush1.bf16.msra.mxu0 0
        %881 = vmatprep.subr.bf16.mxu0 0
        %882 = vmatpush1.bf16.msra.mxu0 0
        %883 = vmatprep.mubr.bf16.mxu0 0
        %884 = vmatmul.mubr.bf16.gmra.mrb[0].mxu0 %v767
        %v885 = vpop.f32.mrb[0].mxu0
        %v886 = vadd.f32 %v556, %v885
        %v887 = vpop.f32.mrb[0].mxu0
        %v888 = vadd.f32 %v560, %v887
        %v889 = vpop.f32.mrb[0].mxu0
        %v890 = vpop.f32.mrb[0].mxu0
        %891 = vdwg.mxu0
        %892 = vmatprep.subr.bf16.mxu0 %v701
        %893 = vmatpush1.bf16.msra.mxu0 %v700
        %894 = vmatprep.subr.bf16.mxu0 %v710
        %895 = vmatpush1.bf16.msra.mxu0 %v709
        %896 = vmatprep.subr.bf16.mxu0 %v719
        %897 = vmatpush1.bf16.msra.mxu0 %v718
        %898 = vmatprep.subr.bf16.mxu0 %v728
        %899 = vmatpush1.bf16.msra.mxu0 %v727
        %900 = vmatprep.subr.bf16.mxu0 0
        %901 = vmatpush1.bf16.msra.mxu0 0
        %902 = vmatprep.subr.bf16.mxu0 0
        %903 = vmatpush1.bf16.msra.mxu0 0
        %904 = vmatprep.subr.bf16.mxu0 0
        %905 = vmatpush1.bf16.msra.mxu0 0
        %906 = vmatprep.subr.bf16.mxu0 0
        %907 = vmatpush1.bf16.msra.mxu0 0
        %908 = vmatprep.subr.bf16.mxu0 0
        %909 = vmatpush1.bf16.msra.mxu0 0
        %910 = vmatprep.subr.bf16.mxu0 0
        %911 = vmatpush1.bf16.msra.mxu0 0
        %912 = vmatprep.subr.bf16.mxu0 0
        %913 = vmatpush1.bf16.msra.mxu0 0
        %914 = vmatprep.subr.bf16.mxu0 0
        %915 = vmatpush1.bf16.msra.mxu0 0
        %916 = vmatprep.subr.bf16.mxu0 0
        %917 = vmatpush1.bf16.msra.mxu0 0
        %918 = vmatprep.subr.bf16.mxu0 0
        %919 = vmatpush1.bf16.msra.mxu0 0
        %920 = vmatprep.subr.bf16.mxu0 0
        %921 = vmatpush1.bf16.msra.mxu0 0
        %922 = vmatprep.subr.bf16.mxu0 0
        %923 = vmatpush1.bf16.msra.mxu0 0
        %924 = vmatprep.mubr.bf16.mxu0 0
        %925 = vmatmul.mubr.bf16.gmra.mrb[0].mxu0 %v767
        %v926 = vpop.f32.mrb[0].mxu0
        %v927 = vadd.f32 %v564, %v926
        %v928 = vpop.f32.mrb[0].mxu0
        %v929 = vadd.f32 %v568, %v928
        %v930 = vpop.f32.mrb[0].mxu0
        %v931 = vpop.f32.mrb[0].mxu0
        %932 = vdwg.mxu0
        %933 = vmatprep.subr.bf16.mxu0 0
        %934 = vmatpush1.bf16.msra.mxu0 %v702
        %935 = vmatprep.subr.bf16.mxu0 0
        %936 = vmatpush1.bf16.msra.mxu0 %v711
        %937 = vmatprep.subr.bf16.mxu0 0
        %938 = vmatpush1.bf16.msra.mxu0 %v720
        %939 = vmatprep.subr.bf16.mxu0 0
        %940 = vmatpush1.bf16.msra.mxu0 %v729
        %941 = vmatprep.subr.bf16.mxu0 0
        %942 = vmatpush1.bf16.msra.mxu0 0
        %943 = vmatprep.subr.bf16.mxu0 0
        %944 = vmatpush1.bf16.msra.mxu0 0
        %945 = vmatprep.subr.bf16.mxu0 0
        %946 = vmatpush1.bf16.msra.mxu0 0
        %947 = vmatprep.subr.bf16.mxu0 0
        %948 = vmatpush1.bf16.msra.mxu0 0
        %949 = vmatprep.subr.bf16.mxu0 0
        %950 = vmatpush1.bf16.msra.mxu0 0
        %951 = vmatprep.subr.bf16.mxu0 0
        %952 = vmatpush1.bf16.msra.mxu0 0
        %953 = vmatprep.subr.bf16.mxu0 0
        %954 = vmatpush1.bf16.msra.mxu0 0
        %955 = vmatprep.subr.bf16.mxu0 0
        %956 = vmatpush1.bf16.msra.mxu0 0
        %957 = vmatprep.subr.bf16.mxu0 0
        %958 = vmatpush1.bf16.msra.mxu0 0
        %959 = vmatprep.subr.bf16.mxu0 0
        %960 = vmatpush1.bf16.msra.mxu0 0
        %961 = vmatprep.subr.bf16.mxu0 0
        %962 = vmatpush1.bf16.msra.mxu0 0
        %963 = vmatprep.subr.bf16.mxu0 0
        %964 = vmatpush1.bf16.msra.mxu0 0
        %965 = vmatprep.mubr.bf16.mxu0 0
        %966 = vmatmul.mubr.bf16.gmra.mrb[0].mxu0 %v767
        %v967 = vpop.f32.mrb[0].mxu0
        %v968 = vadd.f32 %v572, %v967
        %v969 = vpop.f32.mrb[0].mxu0
        %v970 = vpop.f32.mrb[0].mxu0
        %v971 = vpop.f32.mrb[0].mxu0
        %972 = vdwg.mxu0
        %v973 = vpack.c.bf16 %v804, %v804
        %v974 = vpack.c.bf16 %v806, %v806
        %v975 = vpack.c.bf16 %v845, %v845
        %v976 = vpack.c.bf16 %v847, %v847
        %v977 = vpack.c.bf16 %v886, %v886
        %v978 = vpack.c.bf16 %v888, %v888
        %v979 = vpack.c.bf16 %v927, %v927
        %v980 = vpack.c.bf16 %v929, %v929
        %v981 = vpack.c.bf16 %v968, %v968
        %v991 = vunpack.c.l.b16 %v973
        %v992 = vunpack.c.l.b16 %v974
        %v993 = vunpack.c.l.b16 %v975
        %v994 = vunpack.c.l.b16 %v976
        %v995 = vunpack.c.l.b16 %v977
        %v996 = vunpack.c.l.b16 %v978
        %v997 = vunpack.c.l.b16 %v979
        %v998 = vunpack.c.l.b16 %v980
        %v999 = vunpack.c.l.b16 %v981
        %v1000 = vpack.c.b16 %v992, %v991
        %v1001 = vpack.c.b16 %v994, %v993
        %v1002 = vpack.c.b16 %v996, %v995
        %v1003 = vpack.c.b16 %v998, %v997
        %v1004 = vpack.c.b16 %v999, %v999
        %1010 = vst [vmem:[%s337] sm:$0xff] %v1000
        %1011 = vst [vmem:[%s337 + $0x8] sm:$0xff] %v1001
        %1012 = vst [vmem:[%s337 + $0x10] sm:$0xff] %v1002
        %1013 = vst [vmem:[%s337 + $0x18] sm:$0xff] %v1003
        %1014 = vst [vmem:[%s337 + $0x20] sm:$0xf] %v1004
        %s1015 = sand.u32 %s186, 1
        %s1016 = scalar_lea.sflag [#allocation4], %s1015
        %s1017 = sand.u32 %s186, 1
        %s1018 = smul.addr %s1017, 36
        %s1019 = scalar_lea.vmem [#allocation10], %s1018
        // Predicated region
        $region65: #{tpu_custom_call.1} parent=47 // pred_check
          %p1020 = pneg %p196
        $region66: #{tpu_custom_call.1} parent=47 // pred_check_branch
          %1022 = sbr.rel (%p1020) target = $region68
        $region67: #{tpu_custom_call.1} parent=47 // pred_region
          %s1024 = ssub.s32 576, 576
          %1025 = vsyncadd %s1016, %s1024
          %s1026 = smul.addr %s26, 9
          %s1027 = smul.addr %s1026, 64
          %s1028 = scalar_lea.hbm %s7, %s1027
          %s1030 = sshll.u32 %s1019, 4
          %s1031 = int_to_ptr.vmem [resolvable:$true] %s1030
          %1033 = dma.vmem_to_hbm [thread:$0]  %s1031, 576, %s1028, %s1016
        $region68: #{tpu_custom_call.1} parent=47 // pred_fallthru
          _
      $region48: #{tpu_custom_call.1} parent=5 // pred_fallthru
        _
      %p1034 = scmp.le.s32.totalorder 2, %s21
      // Predicated region
      $region69: #{tpu_custom_call.1} parent=5 // pred_check
        %p1035 = pneg %p1034
      $region70: #{tpu_custom_call.1} parent=5 // pred_check_branch
        %1037 = sbr.rel (%p1035) target = $region72
      $region71: #{tpu_custom_call.1} parent=5 // pred_region
        %s1038 = ssub.s32 %s21, 2
        // Predicated region
        $region73: #{tpu_custom_call.1} parent=71 // pred_check
          %p1039 = pneg %p202
        $region74: #{tpu_custom_call.1} parent=71 // pred_check_branch
          %1041 = sbr.rel (%p1039) target = $region76
        $region75: #{tpu_custom_call.1} parent=71 // pred_region
          %s1042 = sand.u32 %s187, 1
          %s1043 = scalar_lea.sflag [#allocation4], %s1042
          %s1044 = sand.u32 %s187, 1
          %s1045 = smul.addr %s1044, 36
          %s1046 = scalar_lea.vmem [#allocation10], %s1045
          %1047 = dma.done %s1043, 576
        $region76: #{tpu_custom_call.1} parent=71 // pred_fallthru
          _
      $region72: #{tpu_custom_call.1} parent=5 // pred_fallthru
        _
    $region6: #{tpu_custom_call.1} parent=1 // loop_footer
      %s25 = sadd.s32 1, %s21
    $region7: #{tpu_custom_call.1} parent=1 // loop_footer_branch
      %20 = sbr.rel target = $region3
    $region8: #{tpu_custom_call.1} parent=1 // loop_exit
      _
    %1048 = vsyncpa [#allocation3], 1
    %s1049 = scalar_lea.sflag [#allocation3], 1
    %1050 = vsyncpa %s1049, 1
    %1051 = vsyncpa [#allocation6], 1
    %1052 = vsyncpa [#allocation9], 1
    %1053 = vsyncpa [#allocation4], 1
    %s1054 = scalar_lea.sflag [#allocation4], 1
    %1055 = vsyncpa %s1054, 1

</llo_original>
